<compile_context>
chip_gen: v5e
topology: v5e:2x2
jax: 0.10.0
libtpu: 0.0.40
codegen_flags: <defaults>
</compile_context>

<pallas_src>
import functools

import jax
import jax.numpy as jnp
from jax.experimental import pallas as pl
from jax.experimental.pallas import tpu as pltpu


def _distill_kl_kernel(ys_ref, yt_ref, out_ref, *, inv_t, scale, batch,
                       block_rows, use_mxu_sums):
    """One batch tile: per-row KL(p_t || p_s) reduced to a scalar partial.

    out_ref is a lane-dense (1, 8, 128) block; only element [0, 0, 0] carries
    the partial (rest is zero) so the wrapper can simply jnp.sum all partials.
    """
    i = pl.program_id(0)

    ys = ys_ref[...].astype(jnp.float32) * inv_t      # student logits / T
    yt = yt_ref[...].astype(jnp.float32) * inv_t      # teacher logits / T

    # Stable shifts over the class (lane) axis.
    ys_shift = ys - jnp.max(ys, axis=1, keepdims=True)
    yt_shift = yt - jnp.max(yt, axis=1, keepdims=True)
    exp_s = jnp.exp(ys_shift)
    exp_t = jnp.exp(yt_shift)

    if use_mxu_sums:
        # Offload lane reductions to the (otherwise idle) MXU.  Only worth it
        # if a bundle dump shows the XLU slot binding; requires lane-aligned C.
        ones = jnp.ones((exp_s.shape[1], 1), jnp.float32)
        z_s = jnp.dot(exp_s, ones, preferred_element_type=jnp.float32)
        z_t = jnp.dot(exp_t, ones, preferred_element_type=jnp.float32)
        weighted_num = jnp.dot(exp_t * (yt_shift - ys_shift), ones,
                               preferred_element_type=jnp.float32)
    else:
        z_s = jnp.sum(exp_s, axis=1, keepdims=True)
        z_t = jnp.sum(exp_t, axis=1, keepdims=True)
        weighted_num = jnp.sum(exp_t * (yt_shift - ys_shift), axis=1,
                               keepdims=True)

    log_z_s = jnp.log(z_s)
    # (TB, 1) reciprocal is cheap; approx=False keeps the 1e-5 match with ref.
    inv_z_t = pl.reciprocal(z_t)

    # log_p_t - log_p_s = (yt_shift - ys_shift) + (log_z_s - log_z_t), and
    # since sum_c p_t = 1 per row:
    #   kl_row = sum_c p_t * (yt_shift - ys_shift) + (log_z_s - log_z_t)
    kl_row = weighted_num * inv_z_t + (log_z_s - jnp.log(z_t))   # (TB, 1)

    # Mask rows past the true global batch (the last tile may be ragged).
    row_ids = i * block_rows + jax.lax.broadcasted_iota(jnp.int32, kl_row.shape, 0)
    kl_row = jnp.where(row_ids < batch, kl_row, 0.0)

    partial = jnp.sum(kl_row) * scale                 # scale = T**2 / global B

    r = jax.lax.broadcasted_iota(jnp.int32, out_ref.shape, 1)
    c = jax.lax.broadcasted_iota(jnp.int32, out_ref.shape, 2)
    out_ref[...] = jnp.where((r == 0) & (c == 0), partial, 0.0)


def _tpu_vmem_capacity_bytes():
    """Physical VMEM of the local TPU; conservative (v7x-sized) fallback."""
    try:
        return int(pltpu.get_tpu_info().vmem_capacity_bytes)
    except Exception:
        return 64 * 1024 * 1024


def distill_kl(y_s, y_t, T, *, block_rows=None, use_mxu_sums=False):
    """Pallas wrapper. y_s, y_t: [B, C] logits (f32 or bf16). Returns scalar f32."""
    assert y_s.shape == y_t.shape and y_s.ndim == 2
    B, C = y_s.shape
    itemsize = jnp.dtype(y_s.dtype).itemsize

    # ---- Generation-aware VMEM budget -------------------------------------
    vmem_cap = _tpu_vmem_capacity_bytes()
    vmem_limit_bytes = int(vmem_cap * 3 // 4)     # 96 MiB (v5e/v6e), 48 MiB (v7x)

    # Honest per-row accounting:
    #   2 inputs x 2 pipeline buffers in the streamed dtype
    # + ~4 full-tile f32 temporaries (ys/yt promoted, shifted, exp) — these do
    #   NOT shrink for bf16 inputs.
    per_row_bytes = 4 * C * itemsize + 4 * C * 4
    tile_budget = int(vmem_limit_bytes * 0.85)    # headroom for output/regalloc
    rows_fit = max(8, tile_budget // per_row_bytes)

    # Byte-sized tiles: as large as fits the budget (block_rows is an optional
    # override only).
    tb = B if block_rows is None else min(B, int(block_rows))
    tb = min(tb, int(rows_fit))

    # Guarantee >=2 grid steps whenever possible so dual-core parts (v7x)
    # shard the "parallel" batch axis across both TensorCores.  The extra
    # grid-step overhead (~0.35us) is negligible.
    if B >= 16:
        half = -(-B // 2)            # ceil(B / 2)
        half = -(-half // 8) * 8     # round up to a sublane multiple
        tb = min(tb, half)

    if tb < B:
        tb = max(8, (tb // 8) * 8)   # sublane-aligned block when actually tiling
    num_tiles = pl.cdiv(B, tb)

    kernel = functools.partial(
        _distill_kl_kernel,
        inv_t=1.0 / float(T),
        scale=float(T) ** 2 / float(B),
        batch=B,
        block_rows=tb,
        use_mxu_sums=use_mxu_sums,
    )

    cost = pl.CostEstimate(
        flops=10 * B * C,
        transcendentals=2 * B * C,
        bytes_accessed=2 * B * C * itemsize + num_tiles * 8 * 128 * 4,
    )

    partials = pl.pallas_call(
        kernel,
        out_shape=jax.ShapeDtypeStruct((num_tiles, 8, 128), jnp.float32),
        grid=(num_tiles,),
        in_specs=[
            pl.BlockSpec((tb, C), lambda i: (i, 0)),   # student logits tile
            pl.BlockSpec((tb, C), lambda i: (i, 0)),   # teacher logits tile
        ],
        out_specs=pl.BlockSpec((1, 8, 128), lambda i: (i, 0, 0)),
        compiler_params=pltpu.CompilerParams(
            dimension_semantics=("parallel",),         # batch tiles independent
            vmem_limit_bytes=vmem_limit_bytes,
        ),
        cost_estimate=cost,
    )(y_s, y_t)
    return jnp.sum(partials)


def _distill_kl_ref(y_s, y_t, T):
    """Pure-JAX reference (matches PyTorch semantics)."""
    log_p_s = jax.nn.log_softmax(y_s / T, axis=1)
    log_p_t = jax.nn.log_softmax(y_t / T, axis=1)
    p_t = jnp.exp(log_p_t)
    kl = p_t * (log_p_t - log_p_s)
    return jnp.sum(kl) * (T ** 2) / y_s.shape[0]


if __name__ == "__main__":
    # Deterministic "module config": temperature T (from DistillKL.__init__).
    T = 4.0

    # Small shape implied by the forward pass: [batch, num_classes] logits.
    B, C = 8, 128
    key = jax.random.PRNGKey(0)
    k_s, k_t = jax.random.split(key)
    y_s = jax.random.normal(k_s, (B, C), dtype=jnp.float32)
    y_t = jax.random.normal(k_t, (B, C), dtype=jnp.float32)

    loss = jax.block_until_ready(distill_kl(y_s, y_t, T))
    ref = jax.block_until_ready(_distill_kl_ref(y_s, y_t, T))
    assert jnp.allclose(loss, ref, rtol=1e-5, atol=1e-5), (loss, ref)

    # Multi-tile + ragged-last-tile (masked) path, with a block_rows override.
    B2, C2 = 300, 256
    k_s2, k_t2 = jax.random.split(jax.random.PRNGKey(1))
    y_s2 = jax.random.normal(k_s2, (B2, C2), dtype=jnp.float32)
    y_t2 = jax.random.normal(k_t2, (B2, C2), dtype=jnp.float32)
    loss2 = jax.block_until_ready(distill_kl(y_s2, y_t2, T, block_rows=96))
    ref2 = jax.block_until_ready(_distill_kl_ref(y_s2, y_t2, T))
    assert jnp.allclose(loss2, ref2, rtol=1e-4, atol=1e-5), (loss2, ref2)

    # Auto (byte-based) tiling path with >=2 tiles, C not a multiple of 128
    # (exercises masked lane reductions on the padded class axis).
    B3, C3 = 64, 100
    k_s3, k_t3 = jax.random.split(jax.random.PRNGKey(2))
    y_s3 = jax.random.normal(k_s3, (B3, C3), dtype=jnp.float32)
    y_t3 = jax.random.normal(k_t3, (B3, C3), dtype=jnp.float32)
    loss3 = jax.block_until_ready(distill_kl(y_s3, y_t3, T))
    ref3 = jax.block_until_ready(_distill_kl_ref(y_s3, y_t3, T))
    assert jnp.allclose(loss3, ref3, rtol=1e-4, atol=1e-5), (loss3, ref3)

    print("KERNEL_OK")
</pallas_src>

<mosaic_0001>
module attributes {stable_mosaic.version = 11 : i64} {
  func.func @_distill_kl_kernel(%arg0: i32, %arg1: memref<8x128xf32, #tpu.memory_space<vmem>>, %arg2: memref<8x128xf32, #tpu.memory_space<vmem>>, %arg3: memref<1x8x128xf32, #tpu.memory_space<vmem>>) attributes {dimension_semantics = [#tpu.dimension_semantics<parallel>], iteration_bounds = array<i64: 1>, scalar_prefetch = 0 : i64, scratch_operands = 0 : i64, tpu.core_type = #tpu.core_type<tc>, window_params = [{transform_indices = @transform_0, window_bounds = array<i64: 8, 128>}, {transform_indices = @transform_1, window_bounds = array<i64: 8, 128>}, {transform_indices = @transform_2, window_bounds = array<i64: 1, 8, 128>}]} {
    %c0 = arith.constant 0 : index
    %c0_0 = arith.constant 0 : index
    %0 = vector.load %arg1[%c0, %c0_0] : memref<8x128xf32, #tpu.memory_space<vmem>>, vector<8x128xf32>
    %cst = arith.constant 2.500000e-01 : f32
    %1 = vector.broadcast %cst : f32 to vector<8x128xf32>
    %2 = arith.mulf %0, %1 : vector<8x128xf32>
    %c0_1 = arith.constant 0 : index
    %c0_2 = arith.constant 0 : index
    %3 = vector.load %arg2[%c0_1, %c0_2] : memref<8x128xf32, #tpu.memory_space<vmem>>, vector<8x128xf32>
    %cst_3 = arith.constant 2.500000e-01 : f32
    %4 = vector.broadcast %cst_3 : f32 to vector<8x128xf32>
    %5 = arith.mulf %3, %4 : vector<8x128xf32>
    %cst_4 = arith.constant dense<0xFF800000> : vector<8xf32>
    %6 = vector.multi_reduction <maximumf>, %2, %cst_4 [1] : vector<8x128xf32> to vector<8xf32>
    %7 = vector.shape_cast %6 : vector<8xf32> to vector<8x1xf32>
    %8 = vector.broadcast %7 : vector<8x1xf32> to vector<8x128xf32>
    %9 = arith.subf %2, %8 : vector<8x128xf32>
    %cst_5 = arith.constant dense<0xFF800000> : vector<8xf32>
    %10 = vector.multi_reduction <maximumf>, %5, %cst_5 [1] : vector<8x128xf32> to vector<8xf32>
    %11 = vector.shape_cast %10 : vector<8xf32> to vector<8x1xf32>
    %12 = vector.broadcast %11 : vector<8x1xf32> to vector<8x128xf32>
    %13 = arith.subf %5, %12 : vector<8x128xf32>
    %14 = math.exp %9 : vector<8x128xf32>
    %15 = math.exp %13 : vector<8x128xf32>
    %cst_6 = arith.constant dense<0.000000e+00> : vector<8xf32>
    %16 = vector.multi_reduction <add>, %14, %cst_6 [1] : vector<8x128xf32> to vector<8xf32>
    %17 = vector.shape_cast %16 : vector<8xf32> to vector<8x1xf32>
    %cst_7 = arith.constant dense<0.000000e+00> : vector<8xf32>
    %18 = vector.multi_reduction <add>, %15, %cst_7 [1] : vector<8x128xf32> to vector<8xf32>
    %19 = vector.shape_cast %18 : vector<8xf32> to vector<8x1xf32>
    %20 = arith.subf %13, %9 : vector<8x128xf32>
    %21 = arith.mulf %15, %20 : vector<8x128xf32>
    %cst_8 = arith.constant dense<0.000000e+00> : vector<8xf32>
    %22 = vector.multi_reduction <add>, %21, %cst_8 [1] : vector<8x128xf32> to vector<8xf32>
    %23 = vector.shape_cast %22 : vector<8xf32> to vector<8x1xf32>
    %24 = math.log %17 : vector<8x1xf32>
    %25 = tpu.reciprocal %19 : vector<8x1xf32> -> vector<8x1xf32>
    %26 = arith.mulf %23, %25 : vector<8x1xf32>
    %27 = math.log %19 : vector<8x1xf32>
    %28 = arith.subf %24, %27 : vector<8x1xf32>
    %29 = arith.addf %26, %28 : vector<8x1xf32>
    %c8_i32 = arith.constant 8 : i32
    %30 = arith.muli %arg0, %c8_i32 : i32
    %31 = tpu.iota {dimensions = array<i32: 0>} : vector<8x1xi32>
    %32 = vector.broadcast %30 : i32 to vector<8x1xi32>
    %33 = arith.addi %32, %31 : vector<8x1xi32>
    %c8_i32_9 = arith.constant 8 : i32
    %34 = vector.broadcast %c8_i32_9 : i32 to vector<8x1xi32>
    %35 = arith.cmpi slt, %33, %34 : vector<8x1xi32>
    %cst_10 = arith.constant 0.000000e+00 : f32
    %36 = vector.broadcast %cst_10 : f32 to vector<8x1xf32>
    %37 = arith.select %35, %29, %36 : vector<8x1xi1>, vector<8x1xf32>
    %38 = vector.shape_cast %37 : vector<8x1xf32> to vector<1x8x1xf32>
    %cst_11 = arith.constant dense<0.000000e+00> : vector<1xf32>
    %39 = vector.multi_reduction <add>, %38, %cst_11 [1, 2] : vector<1x8x1xf32> to vector<1xf32>
    %40 = vector.shape_cast %39 : vector<1xf32> to vector<1x1x1xf32>
    %41 = vector.extract %40[0, 0, 0] : f32 from vector<1x1x1xf32>
    %cst_12 = arith.constant 2.000000e+00 : f32
    %42 = arith.mulf %41, %cst_12 : f32
    %43 = tpu.iota {dimensions = array<i32: 1>} : vector<1x8x128xi32>
    %44 = tpu.iota {dimensions = array<i32: 2>} : vector<1x8x128xi32>
    %c0_i32 = arith.constant 0 : i32
    %45 = vector.broadcast %c0_i32 : i32 to vector<1x8x128xi32>
    %46 = arith.cmpi eq, %43, %45 : vector<1x8x128xi32>
    %c0_i32_13 = arith.constant 0 : i32
    %47 = vector.broadcast %c0_i32_13 : i32 to vector<1x8x128xi32>
    %48 = arith.cmpi eq, %44, %47 : vector<1x8x128xi32>
    %49 = arith.andi %46, %48 : vector<1x8x128xi1>
    %cst_14 = arith.constant 0.000000e+00 : f32
    %50 = vector.broadcast %42 : f32 to vector<1x8x128xf32>
    %51 = vector.broadcast %cst_14 : f32 to vector<1x8x128xf32>
    %52 = arith.select %49, %50, %51 : vector<1x8x128xi1>, vector<1x8x128xf32>
    %c0_15 = arith.constant 0 : index
    %c0_16 = arith.constant 0 : index
    %c0_17 = arith.constant 0 : index
    %53 = vector.load %arg3[%c0_15, %c0_16, %c0_17] : memref<1x8x128xf32, #tpu.memory_space<vmem>>, vector<1x8x128xf32>
    tpu.vector_store %arg3[%c0_15, %c0_16, %c0_17], %52 {strides = array<i32>} : memref<1x8x128xf32, #tpu.memory_space<vmem>>, vector<1x8x128xf32>,
    return
  }
  func.func @transform_0(%arg0: i32) -> (i32, i32) {
    %c0_i32 = arith.constant 0 : i32
    %c0_i32_0 = arith.constant 0 : i32
    return %arg0, %c0_i32 : i32, i32
  }
  func.func @transform_1(%arg0: i32) -> (i32, i32) {
    %c0_i32 = arith.constant 0 : i32
    %c0_i32_0 = arith.constant 0 : i32
    return %arg0, %c0_i32 : i32, i32
  }
  func.func @transform_2(%arg0: i32) -> (i32, i32, i32) {
    %c0_i32 = arith.constant 0 : i32
    %c0_i32_0 = arith.constant 0 : i32
    %c0_i32_1 = arith.constant 0 : i32
    return %arg0, %c0_i32, %c0_i32_0 : i32, i32, i32
  }
}

</mosaic_0001>

<llo_original>
// kernel: tpu_custom_call.1
$region0: #{tpu_custom_call.1}
  #allocation0 [shape = 'u32[]', space=smem, size = 0x4, offset = 0x4, fixed_abs, tag = 'smem constant byte address 0x4 - core index']
  #allocation1 [shape = 'u32[72,128]{1,0:T(1,128)}', space=vmem, size = 0x9000, scoped, tag = 'internal scratch']
  %s0 = inlined_call_operand.hbm [shape: f32[8,128], index: 0, kind: input, shape index: {}]
  %s1 = inlined_call_operand.hbm [shape: f32[8,128], index: 1, kind: input, shape index: {}]
  %s2 = inlined_call_operand.hbm [shape: f32[1,8,128], index: 2, kind: output, shape index: {}]
  %s3 = sld [smem:[#allocation0]]
  $region26: #{tpu_custom_call.1} parent=0
    _
  %s5 = ssub.s32 1, %s3
  %s6 = scalar_select 0, %s5, %s3
  $region1: #{tpu_custom_call.1} parent=0
    #allocation2 [shape = 'u8[4096]{0}', space=vmem, size = 0x1000, scoped, tag = 'input window, operand 0, single buffered']
    #allocation3 [shape = 's32[1]{0}', space=sflag, size = 0x4, scoped, tag = 'scoped memory for tpu_custom_call.1']
    #allocation4 [shape = 's32[1]{0}', space=sflag, size = 0x4, scoped, tag = 'scoped memory for tpu_custom_call.1']
    #allocation5 [shape = 'u8[4096]{0}', space=vmem, size = 0x1000, scoped, tag = 'input window, operand 1, single buffered']
    #allocation6 [shape = 's32[1]{0}', space=sflag, size = 0x4, scoped, tag = 'scoped memory for tpu_custom_call.1']
    #allocation7 [shape = 'u8[4096]{0}', space=vmem, size = 0x1000, scoped, tag = 'output window, operand 0, single buffered']
    %7 = vsyncpa [#allocation3], 0
    %8 = vsyncpa [#allocation6], 0
    %9 = vsyncpa [#allocation4], 0
    // Predicated region
    $region2: #{tpu_custom_call.1} parent=1 // pred_check
      _
    $region3: #{tpu_custom_call.1} parent=1 // pred_check_branch
      %11 = sbr.rel (0) target = $region5
    $region4: #{tpu_custom_call.1} parent=1 // pred_region
      %13 = vsyncadd [#allocation3], 0
      %s15 = sshll.u32 %s0, 4
      %s16 = int_to_ptr.hbm [resolvable:$true] %s15
      %s17 = sshll.u32 [#allocation2], 4
      %s18 = int_to_ptr.vmem [resolvable:$true] %s17
      %20 = dma.hbm_to_vmem [thread:$0]  %s16, 128, %s18, [#allocation3]
    $region5: #{tpu_custom_call.1} parent=1 // pred_fallthru
      _
    // Predicated region
    $region6: #{tpu_custom_call.1} parent=1 // pred_check
      _
    $region7: #{tpu_custom_call.1} parent=1 // pred_check_branch
      %22 = sbr.rel (0) target = $region9
    $region8: #{tpu_custom_call.1} parent=1 // pred_region
      %24 = vsyncadd [#allocation6], 0
      %s26 = sshll.u32 %s1, 4
      %s27 = int_to_ptr.hbm [resolvable:$true] %s26
      %s28 = sshll.u32 [#allocation5], 4
      %s29 = int_to_ptr.vmem [resolvable:$true] %s28
      %31 = dma.hbm_to_vmem [thread:$0]  %s27, 128, %s29, [#allocation6]
    $region9: #{tpu_custom_call.1} parent=1 // pred_fallthru
      _
    // Predicated region
    $region10: #{tpu_custom_call.1} parent=1 // pred_check
      _
    $region11: #{tpu_custom_call.1} parent=1 // pred_check_branch
      %33 = sbr.rel (0) target = $region13
    $region12: #{tpu_custom_call.1} parent=1 // pred_region
      %35 = dma.done [#allocation3], 128
    $region13: #{tpu_custom_call.1} parent=1 // pred_fallthru
      _
    // Predicated region
    $region14: #{tpu_custom_call.1} parent=1 // pred_check
      _
    $region15: #{tpu_custom_call.1} parent=1 // pred_check_branch
      %37 = sbr.rel (0) target = $region17
    $region16: #{tpu_custom_call.1} parent=1 // pred_region
      %39 = dma.done [#allocation6], 128
    $region17: #{tpu_custom_call.1} parent=1 // pred_fallthru
      _
    %v40 = vld [vmem:[#allocation2] sm:$0xff]
    %v41 = vmul.f32 %v40, 0.25
    %v42 = vld [vmem:[#allocation5] sm:$0xff]
    %v43 = vmul.f32 %v42, 0.25
    %44 = vmax.xlane.f32.xlu0 %v41
    %v45 = vpop.xlane.xlu0 %44
    %v46 = vsub.f32 %v41, %v45
    %47 = vmax.xlane.f32.xlu0 %v43
    %v48 = vpop.xlane.xlu0 %47
    %v49 = vsub.f32 %v43, %v48
    %v50 = vmul.f32 %v46, 1.442695
    %v51 = vpow.pop %v50
    %v52 = vmul.f32 %v49, 1.442695
    %v53 = vpow.pop %v52
    %54 = vadd.xlane.f32.xlu0 %v51
    %v55 = vpop.xlane.xlu0 %54
    %56 = vadd.xlane.f32.xlu0 %v53
    %v57 = vpop.xlane.xlu0 %56
    %v58 = vsub.f32 %v49, %v46
    %v59 = vmul.f32 %v53, %v58
    %60 = vadd.xlane.f32.xlu0 %v59
    %v61 = vpop.xlane.xlu0 %60
    %v62 = vlog2.pop %v55
    %v63 = vmul.f32 %v62, 0.6931472
    %v64 = vrcp.pop %v57
    %v65 = vmul.f32 %v57, %v64
    %v66 = vsub.f32 1.0, %v65
    %v67 = vmul.f32 %v64, %v66
    %v68 = vadd.f32 %v64, %v67
    %vm69 = vweird.f32 %v57
    %vm70 = vweird.f32 %v64
    %vm71 = vmor %vm69, %vm70
    %v72 = vsel %vm71, %v64, %v68
    %v73 = vand.u32 2147483647, %v57
    %vm74 = vcmp.eq.f32.partialorder %v73, 8.507059e+37
    %v75 = vand.u32 %v57, 2147483648
    %v76 = vor.u32 1.1754944e-38, %v75
    %v77 = vsel %vm74, %v76, %v72
    %v78 = vmul.f32 %v61, %v77
    %v79 = vlog2.pop %v57
    %v80 = vmul.f32 %v79, 0.6931472
    %v81 = vsub.f32 %v63, %v80
    %v82 = vadd.f32 %v78, %v81
    %s83 = smul.u32 0, 8
    %v84 = vlaneseq
    %v85 = vshrl.u32 %v84, 7
    %v86 = vstv %s83
    %v87 = vadd.s32 %v86, %v85
    %vm88 = vcmp.lt.s32.totalorder %v87, 8
    %v89 = vsel %vm88, %v82, 0.0
    %vm90 = vcmask 7168
    %v91 = vsel %vm90, %v89, 0.0
    %92 = vadd.xlane.f32.xlu0 %v91
    %v93 = vpop.xlane.xlu0 %92
    %v94 = vrot.slane %v93, 4
    %v95 = vadd.f32 %v93, %v94
    %v96 = vrot.slane %v95, 2
    %v97 = vadd.f32 %v95, %v96
    %v98 = vrot.slane %v97, 1
    %v99 = vadd.f32 %v97, %v98
    %s100 = vtos %v99
    %s101 = smul.f32 %s100, 2.0
    %v102 = vlaneseq
    %v103 = vand.u32 %v102, 127
    %vm104 = vcmp.eq.s32.totalorder %v85, 0
    %vm105 = vcmp.eq.s32.totalorder %v103, 0
    %vm106 = vmand %vm104, %vm105
    %v107 = vstv %s101
    %v108 = vsel %vm106, %v107, 0.0
    %109 = vst [vmem:[#allocation7] sm:$0xff] %v108
    // Predicated region
    $region18: #{tpu_custom_call.1} parent=1 // pred_check
      _
    $region19: #{tpu_custom_call.1} parent=1 // pred_check_branch
      %111 = sbr.rel (0) target = $region21
    $region20: #{tpu_custom_call.1} parent=1 // pred_region
      %113 = vsyncadd [#allocation4], 0
      %s115 = sshll.u32 [#allocation7], 4
      %s116 = int_to_ptr.vmem [resolvable:$true] %s115
      %s117 = sshll.u32 %s2, 4
      %s118 = int_to_ptr.hbm [resolvable:$true] %s117
      %120 = dma.vmem_to_hbm [thread:$0]  %s116, 128, %s118, [#allocation4]
    $region21: #{tpu_custom_call.1} parent=1 // pred_fallthru
      _
    // Predicated region
    $region22: #{tpu_custom_call.1} parent=1 // pred_check
      _
    $region23: #{tpu_custom_call.1} parent=1 // pred_check_branch
      %122 = sbr.rel (0) target = $region25
    $region24: #{tpu_custom_call.1} parent=1 // pred_region
      %124 = dma.done [#allocation4], 128
    $region25: #{tpu_custom_call.1} parent=1 // pred_fallthru
      _
    %125 = vsyncpa [#allocation3], 1
    %126 = vsyncpa [#allocation6], 1
    %127 = vsyncpa [#allocation4], 1

</llo_original>
